<compile_context>
chip_gen: v5e
topology: v5e:2x2
jax: 0.10.0
libtpu: 0.0.40
codegen_flags: <defaults>
</compile_context>

<pallas_src>
import functools
import math

import jax
import jax.numpy as jnp
from jax.experimental import pallas as pl
from jax.experimental.pallas import tpu as pltpu


def _concat_conv_kernel(x_ref, w_ref, b_ref, o_ref, *, ksize, row_stride):
    # x_ref: (Cin, H*Wp)          -- one batch image, spatial flattened on lanes
    # w_ref: (KH*KW, Cout, Cin)   -- per-tap weight matrices
    # b_ref: (Cout, 1)            -- effective bias (t-channel folded in)
    # o_ref: (Cout, H*Wp)         -- lane-dense output block (NC(HW) layout)
    x = x_ref[...]
    w = w_ref[...]
    hw = x.shape[-1]

    acc = None
    for kh in range(ksize):
        for kw in range(ksize):
            s = kh * row_stride + kw
            # xs[:, p] == x[:, p + s]  (valid output lanes never wrap).
            xs = x if s == 0 else pltpu.roll(x, shift=hw - s, axis=1)
            tap = jnp.dot(w[kh * ksize + kw], xs,
                          preferred_element_type=jnp.float32)
            acc = tap if acc is None else acc + tap

    o_ref[...] = (acc + b_ref[...]).astype(o_ref.dtype)


def concat_conv2d(t, x_nchw, weight_oihw, bias, *, ksize=3):
    """Forward pass of ConcatConv2d (stride=1, padding=0, dilation=1, groups=1).

    t:            scalar float
    x_nchw:       (N, Cin, H, W)         -- PyTorch layout
    weight_oihw:  (Cout, Cin+1, KH, KW)  -- PyTorch Conv2d weight layout
    bias:         (Cout,)
    returns:      (N, Cout, Ho, Wo)      -- PyTorch layout, Ho = H - ksize + 1
    """
    N, Cin, H, W = x_nchw.shape
    Cout = weight_oihw.shape[0]
    KH = KW = ksize
    Ho, Wo = H - KH + 1, W - KW + 1

    # --- Fold the constant-t channel into the bias (exact: padding=0, stride=1,
    #     every output pixel sees the t channel at all KH*KW taps). -------------
    w_t = weight_oihw[:, 0, :, :]                              # (Cout, KH, KW)
    b_eff = bias + jnp.asarray(t, bias.dtype) * jnp.sum(w_t, axis=(1, 2))
    w_x = weight_oihw[:, 1:, :, :]                             # (Cout, Cin, KH, KW)

    # --- Pad W so the flattened spatial axis is a multiple of 128 (lane-dense).
    g = math.gcd(H, 128)
    wq = 128 // g
    Wp = ((W + wq - 1) // wq) * wq
    if Wp != W:
        x_nchw = jnp.pad(x_nchw, ((0, 0), (0, 0), (0, 0), (0, Wp - W)))
    HWp = H * Wp
    x_flat = x_nchw.reshape(N, Cin, HWp)                       # free reshape (contiguous)

    # Tiny weight/bias rearrangements (glue).
    w_k = jnp.transpose(w_x, (2, 3, 0, 1)).reshape(KH * KW, Cout, Cin)
    b2d = b_eff.reshape(Cout, 1)

    # TODO(synk): for very large H*W a second grid axis tiling the flattened
    # spatial dim (multiple-of-128 blocks) would be needed to bound VMEM; the
    # per-batch block here is tiny (<16 KiB) for this module's shapes.
    out_flat = pl.pallas_call(
        functools.partial(_concat_conv_kernel, ksize=ksize, row_stride=Wp),
        out_shape=jax.ShapeDtypeStruct((N, Cout, HWp), x_nchw.dtype),
        grid=(N,),
        in_specs=[
            pl.BlockSpec((None, Cin, HWp), lambda n: (n, 0, 0)),        # per-batch image
            pl.BlockSpec((KH * KW, Cout, Cin), lambda n: (0, 0, 0)),    # replicated weights
            pl.BlockSpec((Cout, 1), lambda n: (0, 0)),                  # replicated bias
        ],
        out_specs=pl.BlockSpec((None, Cout, HWp), lambda n: (n, 0, 0)),
        compiler_params=pltpu.CompilerParams(
            dimension_semantics=("parallel",)),
    )(x_flat, w_k, b2d)

    # Valid region: p = ho*Wp + wo with ho < Ho, wo < Wo.  Emits NCHW directly.
    return out_flat.reshape(N, Cout, H, Wp)[:, :, :Ho, :Wo]


def _reference(t, x_nchw, weight_oihw, bias, *, ksize=3):
    """Pure-JAX reference (lax conv) matching the PyTorch module."""
    N, Cin, H, W = x_nchw.shape
    tt = jnp.full((N, 1, H, W), t, dtype=x_nchw.dtype)
    ttx = jnp.concatenate([tt, x_nchw], axis=1)
    out = jax.lax.conv_general_dilated(
        ttx, weight_oihw,
        window_strides=(1, 1), padding="VALID",
        dimension_numbers=("NCHW", "OIHW", "NCHW"))
    return out + bias.reshape(1, -1, 1, 1)


if __name__ == "__main__":
    # Module config: ConcatConv2d(dim_in=4, dim_out=8), defaults
    # (ksize=3, stride=1, padding=0, dilation=1, groups=1, bias=True).
    dim_in, dim_out, ksize = 4, 8, 3
    N, H, W = 2, 16, 16

    key = jax.random.PRNGKey(0)
    kx, kw, kb = jax.random.split(key, 3)

    x = jax.random.normal(kx, (N, dim_in, H, W), dtype=jnp.float32)
    t = 0.5

    # Deterministic PyTorch-style init: U(-bound, bound), bound = 1/sqrt(fan_in).
    fan_in = (dim_in + 1) * ksize * ksize
    bound = 1.0 / (fan_in ** 0.5)
    weight = jax.random.uniform(kw, (dim_out, dim_in + 1, ksize, ksize),
                                dtype=jnp.float32, minval=-bound, maxval=bound)
    bias = jax.random.uniform(kb, (dim_out,), dtype=jnp.float32,
                              minval=-bound, maxval=bound)

    out = concat_conv2d(t, x, weight, bias, ksize=ksize)
    out = jax.block_until_ready(out)

    ref = _reference(t, x, weight, bias, ksize=ksize)
    assert out.shape == (N, dim_out, H - ksize + 1, W - ksize + 1), out.shape
    assert jnp.allclose(out, ref, atol=1e-4, rtol=1e-4), float(
        jnp.max(jnp.abs(out - ref)))

    print("KERNEL_OK")
</pallas_src>

<mosaic_0001>
module attributes {stable_mosaic.version = 11 : i64} {
  func.func @_concat_conv_kernel(%arg0: i32, %arg1: memref<1x4x256xf32, #tpu.memory_space<vmem>>, %arg2: memref<9x8x4xf32, #tpu.memory_space<vmem>>, %arg3: memref<8x1xf32, #tpu.memory_space<vmem>>, %arg4: memref<1x8x256xf32, #tpu.memory_space<vmem>>) attributes {dimension_semantics = [#tpu.dimension_semantics<parallel>], iteration_bounds = array<i64: 2>, scalar_prefetch = 0 : i64, scratch_operands = 0 : i64, tpu.core_type = #tpu.core_type<tc>, window_params = [{transform_indices = @transform_0, window_bounds = array<i64: 1, 4, 256>}, {pipeline_mode = #tpu.pipeline_mode<synchronous>, transform_indices = @transform_1, window_bounds = array<i64: 9, 8, 4>}, {pipeline_mode = #tpu.pipeline_mode<synchronous>, transform_indices = @transform_2, window_bounds = array<i64: 8, 1>}, {transform_indices = @transform_3, window_bounds = array<i64: 1, 8, 256>}]} {
    %c0 = arith.constant 0 : index
    %c0_0 = arith.constant 0 : index
    %c0_1 = arith.constant 0 : index
    %0 = vector.load %arg1[%c0, %c0_0, %c0_1] : memref<1x4x256xf32, #tpu.memory_space<vmem>>, vector<1x4x256xf32>
    %1 = vector.shape_cast %0 : vector<1x4x256xf32> to vector<4x256xf32>
    %c0_2 = arith.constant 0 : index
    %c0_3 = arith.constant 0 : index
    %c0_4 = arith.constant 0 : index
    %2 = vector.load %arg2[%c0_2, %c0_3, %c0_4] : memref<9x8x4xf32, #tpu.memory_space<vmem>>, vector<9x8x4xf32>
    %3 = vector.extract_strided_slice %2 {offsets = [0, 0, 0], sizes = [1, 8, 4], strides = [1, 1, 1]} : vector<9x8x4xf32> to vector<1x8x4xf32>
    %4 = vector.shape_cast %3 : vector<1x8x4xf32> to vector<8x4xf32>
    %cst = arith.constant dense<0.000000e+00> : vector<8x256xf32>
    %5 = tpu.matmul %4, %1, %cst {dimension_numbers = #tpu.dot_dimension_numbers<[1], [0], [0], [1], [0, 0, 1, 1], [], []>} : vector<8x4xf32>, vector<4x256xf32>, vector<8x256xf32> -> vector<8x256xf32>
    %c255_i32 = arith.constant 255 : i32
    %6 = tpu.dynamic_rotate %1 by %c255_i32 dim 1 : vector<4x256xf32>, i32 -> vector<4x256xf32>
    %7 = vector.extract_strided_slice %2 {offsets = [1, 0, 0], sizes = [1, 8, 4], strides = [1, 1, 1]} : vector<9x8x4xf32> to vector<1x8x4xf32>
    %8 = vector.shape_cast %7 : vector<1x8x4xf32> to vector<8x4xf32>
    %cst_5 = arith.constant dense<0.000000e+00> : vector<8x256xf32>
    %9 = tpu.matmul %8, %6, %cst_5 {dimension_numbers = #tpu.dot_dimension_numbers<[1], [0], [0], [1], [0, 0, 1, 1], [], []>} : vector<8x4xf32>, vector<4x256xf32>, vector<8x256xf32> -> vector<8x256xf32>
    %10 = arith.addf %5, %9 : vector<8x256xf32>
    %c254_i32 = arith.constant 254 : i32
    %11 = tpu.dynamic_rotate %1 by %c254_i32 dim 1 : vector<4x256xf32>, i32 -> vector<4x256xf32>
    %12 = vector.extract_strided_slice %2 {offsets = [2, 0, 0], sizes = [1, 8, 4], strides = [1, 1, 1]} : vector<9x8x4xf32> to vector<1x8x4xf32>
    %13 = vector.shape_cast %12 : vector<1x8x4xf32> to vector<8x4xf32>
    %cst_6 = arith.constant dense<0.000000e+00> : vector<8x256xf32>
    %14 = tpu.matmul %13, %11, %cst_6 {dimension_numbers = #tpu.dot_dimension_numbers<[1], [0], [0], [1], [0, 0, 1, 1], [], []>} : vector<8x4xf32>, vector<4x256xf32>, vector<8x256xf32> -> vector<8x256xf32>
    %15 = arith.addf %10, %14 : vector<8x256xf32>
    %c240_i32 = arith.constant 240 : i32
    %16 = tpu.dynamic_rotate %1 by %c240_i32 dim 1 : vector<4x256xf32>, i32 -> vector<4x256xf32>
    %17 = vector.extract_strided_slice %2 {offsets = [3, 0, 0], sizes = [1, 8, 4], strides = [1, 1, 1]} : vector<9x8x4xf32> to vector<1x8x4xf32>
    %18 = vector.shape_cast %17 : vector<1x8x4xf32> to vector<8x4xf32>
    %cst_7 = arith.constant dense<0.000000e+00> : vector<8x256xf32>
    %19 = tpu.matmul %18, %16, %cst_7 {dimension_numbers = #tpu.dot_dimension_numbers<[1], [0], [0], [1], [0, 0, 1, 1], [], []>} : vector<8x4xf32>, vector<4x256xf32>, vector<8x256xf32> -> vector<8x256xf32>
    %20 = arith.addf %15, %19 : vector<8x256xf32>
    %c239_i32 = arith.constant 239 : i32
    %21 = tpu.dynamic_rotate %1 by %c239_i32 dim 1 : vector<4x256xf32>, i32 -> vector<4x256xf32>
    %22 = vector.extract_strided_slice %2 {offsets = [4, 0, 0], sizes = [1, 8, 4], strides = [1, 1, 1]} : vector<9x8x4xf32> to vector<1x8x4xf32>
    %23 = vector.shape_cast %22 : vector<1x8x4xf32> to vector<8x4xf32>
    %cst_8 = arith.constant dense<0.000000e+00> : vector<8x256xf32>
    %24 = tpu.matmul %23, %21, %cst_8 {dimension_numbers = #tpu.dot_dimension_numbers<[1], [0], [0], [1], [0, 0, 1, 1], [], []>} : vector<8x4xf32>, vector<4x256xf32>, vector<8x256xf32> -> vector<8x256xf32>
    %25 = arith.addf %20, %24 : vector<8x256xf32>
    %c238_i32 = arith.constant 238 : i32
    %26 = tpu.dynamic_rotate %1 by %c238_i32 dim 1 : vector<4x256xf32>, i32 -> vector<4x256xf32>
    %27 = vector.extract_strided_slice %2 {offsets = [5, 0, 0], sizes = [1, 8, 4], strides = [1, 1, 1]} : vector<9x8x4xf32> to vector<1x8x4xf32>
    %28 = vector.shape_cast %27 : vector<1x8x4xf32> to vector<8x4xf32>
    %cst_9 = arith.constant dense<0.000000e+00> : vector<8x256xf32>
    %29 = tpu.matmul %28, %26, %cst_9 {dimension_numbers = #tpu.dot_dimension_numbers<[1], [0], [0], [1], [0, 0, 1, 1], [], []>} : vector<8x4xf32>, vector<4x256xf32>, vector<8x256xf32> -> vector<8x256xf32>
    %30 = arith.addf %25, %29 : vector<8x256xf32>
    %c224_i32 = arith.constant 224 : i32
    %31 = tpu.dynamic_rotate %1 by %c224_i32 dim 1 : vector<4x256xf32>, i32 -> vector<4x256xf32>
    %32 = vector.extract_strided_slice %2 {offsets = [6, 0, 0], sizes = [1, 8, 4], strides = [1, 1, 1]} : vector<9x8x4xf32> to vector<1x8x4xf32>
    %33 = vector.shape_cast %32 : vector<1x8x4xf32> to vector<8x4xf32>
    %cst_10 = arith.constant dense<0.000000e+00> : vector<8x256xf32>
    %34 = tpu.matmul %33, %31, %cst_10 {dimension_numbers = #tpu.dot_dimension_numbers<[1], [0], [0], [1], [0, 0, 1, 1], [], []>} : vector<8x4xf32>, vector<4x256xf32>, vector<8x256xf32> -> vector<8x256xf32>
    %35 = arith.addf %30, %34 : vector<8x256xf32>
    %c223_i32 = arith.constant 223 : i32
    %36 = tpu.dynamic_rotate %1 by %c223_i32 dim 1 : vector<4x256xf32>, i32 -> vector<4x256xf32>
    %37 = vector.extract_strided_slice %2 {offsets = [7, 0, 0], sizes = [1, 8, 4], strides = [1, 1, 1]} : vector<9x8x4xf32> to vector<1x8x4xf32>
    %38 = vector.shape_cast %37 : vector<1x8x4xf32> to vector<8x4xf32>
    %cst_11 = arith.constant dense<0.000000e+00> : vector<8x256xf32>
    %39 = tpu.matmul %38, %36, %cst_11 {dimension_numbers = #tpu.dot_dimension_numbers<[1], [0], [0], [1], [0, 0, 1, 1], [], []>} : vector<8x4xf32>, vector<4x256xf32>, vector<8x256xf32> -> vector<8x256xf32>
    %40 = arith.addf %35, %39 : vector<8x256xf32>
    %c222_i32 = arith.constant 222 : i32
    %41 = tpu.dynamic_rotate %1 by %c222_i32 dim 1 : vector<4x256xf32>, i32 -> vector<4x256xf32>
    %42 = vector.extract_strided_slice %2 {offsets = [8, 0, 0], sizes = [1, 8, 4], strides = [1, 1, 1]} : vector<9x8x4xf32> to vector<1x8x4xf32>
    %43 = vector.shape_cast %42 : vector<1x8x4xf32> to vector<8x4xf32>
    %cst_12 = arith.constant dense<0.000000e+00> : vector<8x256xf32>
    %44 = tpu.matmul %43, %41, %cst_12 {dimension_numbers = #tpu.dot_dimension_numbers<[1], [0], [0], [1], [0, 0, 1, 1], [], []>} : vector<8x4xf32>, vector<4x256xf32>, vector<8x256xf32> -> vector<8x256xf32>
    %45 = arith.addf %40, %44 : vector<8x256xf32>
    %c0_13 = arith.constant 0 : index
    %c0_14 = arith.constant 0 : index
    %46 = vector.load %arg3[%c0_13, %c0_14] : memref<8x1xf32, #tpu.memory_space<vmem>>, vector<8x1xf32>
    %47 = vector.broadcast %46 : vector<8x1xf32> to vector<8x256xf32>
    %48 = arith.addf %45, %47 : vector<8x256xf32>
    %c0_15 = arith.constant 0 : index
    %c0_16 = arith.constant 0 : index
    %c0_17 = arith.constant 0 : index
    %49 = vector.load %arg4[%c0_15, %c0_16, %c0_17] : memref<1x8x256xf32, #tpu.memory_space<vmem>>, vector<1x8x256xf32>
    %50 = vector.shape_cast %49 : vector<1x8x256xf32> to vector<8x256xf32>
    %51 = vector.shape_cast %48 : vector<8x256xf32> to vector<1x8x256xf32>
    tpu.vector_store %arg4[%c0_15, %c0_16, %c0_17], %51 {strides = array<i32>} : memref<1x8x256xf32, #tpu.memory_space<vmem>>, vector<1x8x256xf32>,
    return
  }
  func.func @transform_0(%arg0: i32) -> (i32, i32, i32) {
    %c0_i32 = arith.constant 0 : i32
    %c0_i32_0 = arith.constant 0 : i32
    %c0_i32_1 = arith.constant 0 : i32
    return %arg0, %c0_i32, %c0_i32_0 : i32, i32, i32
  }
  func.func @transform_1(%arg0: i32) -> (i32, i32, i32) {
    %c0_i32 = arith.constant 0 : i32
    %c0_i32_0 = arith.constant 0 : i32
    %c0_i32_1 = arith.constant 0 : i32
    %c0_i32_2 = arith.constant 0 : i32
    return %c0_i32, %c0_i32_0, %c0_i32_1 : i32, i32, i32
  }
  func.func @transform_2(%arg0: i32) -> (i32, i32) {
    %c0_i32 = arith.constant 0 : i32
    %c0_i32_0 = arith.constant 0 : i32
    %c0_i32_1 = arith.constant 0 : i32
    return %c0_i32, %c0_i32_0 : i32, i32
  }
  func.func @transform_3(%arg0: i32) -> (i32, i32, i32) {
    %c0_i32 = arith.constant 0 : i32
    %c0_i32_0 = arith.constant 0 : i32
    %c0_i32_1 = arith.constant 0 : i32
    return %arg0, %c0_i32, %c0_i32_0 : i32, i32, i32
  }
}

</mosaic_0001>

<llo_original>
// kernel: tpu_custom_call.1
$region0: #{tpu_custom_call.1}
  #allocation0 [shape = 'u32[]', space=smem, size = 0x4, offset = 0x4, fixed_abs, tag = 'smem constant byte address 0x4 - core index']
  #allocation1 [shape = 'u32[72,128]{1,0:T(1,128)}', space=vmem, size = 0x9000, scoped, tag = 'internal scratch']
  %s0 = inlined_call_operand.vmem [shape: f32[2,4,256], index: 0, kind: input, shape index: {}]
  %s1 = inlined_call_operand.vmem [shape: f32[9,8,4], index: 1, kind: input, shape index: {}]
  %s2 = inlined_call_operand.vmem [shape: f32[8,1], index: 2, kind: input, shape index: {}]
  %s3 = inlined_call_operand.hbm [shape: f32[2,8,256], index: 3, kind: output, shape index: {}]
  %s4 = sld [smem:[#allocation0]]
  $region45: #{tpu_custom_call.1} parent=0
    _
  %s6 = ssub.s32 1, %s4
  %s7 = scalar_select 0, %s6, %s4
  $region1: #{tpu_custom_call.1} parent=0
    #allocation2 [shape = 'u8[16384]{0}', space=vmem, size = 0x4000, scoped, tag = 'output window, operand 0']
    #allocation3 [shape = 's32[2]{0}', space=sflag, size = 0x8, scoped, tag = 'scoped memory for tpu_custom_call.1']
    %8 = vsyncpa [#allocation3], 0
    %s9 = scalar_lea.sflag [#allocation3], 1
    %10 = vsyncpa %s9, 0
    loop: start=0, step=1, limit=4
    $region2: #{tpu_custom_call.1} parent=1 // loop_pre_header
      _
    $region3: #{tpu_custom_call.1} parent=1 // loop_header
      %s12 = sphi 0, %s16
      %p13 = scmp.ge.s32.totalorder %s12, 4
      %s22 = sphi 0, %s24
      %s25 = sphi 0, %s22
      %s26 = sphi 0, %s25
      %s42 = sphi 0, %s26
      %s46 = sphi 0, %s46
      %s48 = sphi 0, %s46
      %s49 = sphi 0, %s48
      %s63 = sphi 0, %s49
      %s67 = sphi 0, %s67
      %s69 = sphi 0, %s67
      %s70 = sphi 0, %s69
      %s84 = sphi 0, %s70
      %s90 = sphi 0, %s92
      %s93 = sphi 0, %s90
      %s94 = sphi 0, %s93
      %s110 = sphi 0, %s94
    $region4: #{tpu_custom_call.1} parent=1 // loop_header_branch
      %15 = sbr.rel (%p13) target = $region8
    $region5: #{tpu_custom_call.1} parent=1 // loop_body
      %s17 = ssub.s32 %s12, 1
      %s18 = ssub.s32 %s12, 2
      %s19 = sadd.s32 %s12, 1
      %s20 = ssub.s32 %s12, %s19
      %p21 = scmp.eq.s32.totalorder %s20, 0
      %s23 = sadd.s32 %s22, 1
      %s24 = scalar_select %p21, %s22, %s23
      %p27 = pneg %p21
      %p28 = scmp.eq.s32.totalorder %s12, 1
      %p29 = por %p27, %p28
      %p30 = scmp.ne.s32.totalorder %s22, %s25
      %p31 = scmp.eq.s32.totalorder %s12, 0
      %p32 = por %p30, %p31
      %p33 = scmp.ne.s32.totalorder %s22, %s25
      %p34 = scmp.eq.s32.totalorder %s17, 1
      %p35 = por %p33, %p34
      %p36 = scmp.ne.s32.totalorder %s25, %s26
      %p37 = scmp.eq.s32.totalorder %s17, 0
      %p38 = por %p36, %p37
      %p39 = scmp.ne.s32.totalorder %s25, %s26
      %p40 = scmp.eq.s32.totalorder %s18, 1
      %p41 = por %p39, %p40
      %p43 = scmp.ne.s32.totalorder %s26, %s42
      %p44 = scmp.eq.s32.totalorder %s18, 0
      %p45 = por %p43, %p44
      %s47 = sadd.s32 %s46, 1
      %p50 = scmp.eq.s32.totalorder %s12, 1
      %p51 = scmp.ne.s32.totalorder %s46, %s48
      %p52 = scmp.eq.s32.totalorder %s12, 0
      %p53 = por %p51, %p52
      %p54 = scmp.ne.s32.totalorder %s46, %s48
      %p55 = scmp.eq.s32.totalorder %s17, 1
      %p56 = por %p54, %p55
      %p57 = scmp.ne.s32.totalorder %s48, %s49
      %p58 = scmp.eq.s32.totalorder %s17, 0
      %p59 = por %p57, %p58
      %p60 = scmp.ne.s32.totalorder %s48, %s49
      %p61 = scmp.eq.s32.totalorder %s18, 1
      %p62 = por %p60, %p61
      %p64 = scmp.ne.s32.totalorder %s49, %s63
      %p65 = scmp.eq.s32.totalorder %s18, 0
      %p66 = por %p64, %p65
      %s68 = sadd.s32 %s67, 1
      %p71 = scmp.eq.s32.totalorder %s12, 1
      %p72 = scmp.ne.s32.totalorder %s67, %s69
      %p73 = scmp.eq.s32.totalorder %s12, 0
      %p74 = por %p72, %p73
      %p75 = scmp.ne.s32.totalorder %s67, %s69
      %p76 = scmp.eq.s32.totalorder %s17, 1
      %p77 = por %p75, %p76
      %p78 = scmp.ne.s32.totalorder %s69, %s70
      %p79 = scmp.eq.s32.totalorder %s17, 0
      %p80 = por %p78, %p79
      %p81 = scmp.ne.s32.totalorder %s69, %s70
      %p82 = scmp.eq.s32.totalorder %s18, 1
      %p83 = por %p81, %p82
      %p85 = scmp.ne.s32.totalorder %s70, %s84
      %p86 = scmp.eq.s32.totalorder %s18, 0
      %p87 = por %p85, %p86
      %s88 = ssub.s32 %s12, %s19
      %p89 = scmp.eq.s32.totalorder %s88, 0
      %s91 = sadd.s32 %s90, 1
      %s92 = scalar_select %p89, %s90, %s91
      %p95 = pneg %p89
      %p96 = scmp.eq.s32.totalorder %s12, 1
      %p97 = por %p95, %p96
      %p98 = scmp.ne.s32.totalorder %s90, %s93
      %p99 = scmp.eq.s32.totalorder %s12, 0
      %p100 = por %p98, %p99
      %p101 = scmp.ne.s32.totalorder %s90, %s93
      %p102 = scmp.eq.s32.totalorder %s17, 1
      %p103 = por %p101, %p102
      %p104 = scmp.ne.s32.totalorder %s93, %s94
      %p105 = scmp.eq.s32.totalorder %s17, 0
      %p106 = por %p104, %p105
      %p107 = scmp.ne.s32.totalorder %s93, %s94
      %p108 = scmp.eq.s32.totalorder %s18, 1
      %p109 = por %p107, %p108
      %p111 = scmp.ne.s32.totalorder %s94, %s110
      %p112 = scmp.eq.s32.totalorder %s18, 0
      %p113 = por %p111, %p112
      %p114 = scmp.le.s32.totalorder 1, %s12
      %p115 = scmp.lt.s32.totalorder %s12, 3
      %p116 = pnand %p114, %p115
      %p117 = pneg %p116
      // Predicated region
      $region9: #{tpu_custom_call.1} parent=5 // pred_check
        _
      $region10: #{tpu_custom_call.1} parent=5 // pred_check_branch
        %119 = sbr.rel (%p116) target = $region12
      $region11: #{tpu_custom_call.1} parent=5 // pred_region
        %s120 = ssub.s32 %s12, 1
        // Predicated region
        $region13: #{tpu_custom_call.1} parent=11 // pred_check
          %p121 = pneg %p59
        $region14: #{tpu_custom_call.1} parent=11 // pred_check_branch
          %123 = sbr.rel (%p121) target = $region16
        $region15: #{tpu_custom_call.1} parent=11 // pred_region
          _
        $region16: #{tpu_custom_call.1} parent=11 // pred_fallthru
          _
        // Predicated region
        $region17: #{tpu_custom_call.1} parent=11 // pred_check
          %p124 = pneg %p80
        $region18: #{tpu_custom_call.1} parent=11 // pred_check_branch
          %126 = sbr.rel (%p124) target = $region20
        $region19: #{tpu_custom_call.1} parent=11 // pred_region
          _
        $region20: #{tpu_custom_call.1} parent=11 // pred_fallthru
          _
      $region12: #{tpu_custom_call.1} parent=5 // pred_fallthru
        _
      %p127 = scmp.lt.s32.totalorder %s12, 2
      // Predicated region
      $region21: #{tpu_custom_call.1} parent=5 // pred_check
        %p128 = pneg %p127
      $region22: #{tpu_custom_call.1} parent=5 // pred_check_branch
        %130 = sbr.rel (%p128) target = $region24
      $region23: #{tpu_custom_call.1} parent=5 // pred_region
        // Predicated region
        $region25: #{tpu_custom_call.1} parent=23 // pred_check
          %p131 = pneg %p32
        $region26: #{tpu_custom_call.1} parent=23 // pred_check_branch
          %133 = sbr.rel (%p131) target = $region28
        $region27: #{tpu_custom_call.1} parent=23 // pred_region
          %p134 = scmp.lt.s32.totalorder %s12, 1
          %s135 = scalar_select %p134, %s12, 1
          %s136 = smul.addr %s135, 2
          %s137 = smul.addr %s136, 4
          %s138 = scalar_lea.vmem %s0, %s137
        $region28: #{tpu_custom_call.1} parent=23 // pred_fallthru
          _
      $region24: #{tpu_custom_call.1} parent=5 // pred_fallthru
        _
      %p139 = scmp.le.s32.totalorder 1, %s12
      %p140 = scmp.lt.s32.totalorder %s12, 3
      %p141 = pnand %p139, %p140
      %p142 = pneg %p141
      // Predicated region
      $region29: #{tpu_custom_call.1} parent=5 // pred_check
        _
      $region30: #{tpu_custom_call.1} parent=5 // pred_check_branch
        %144 = sbr.rel (%p141) target = $region32
      $region31: #{tpu_custom_call.1} parent=5 // pred_region
        %s145 = ssub.s32 %s12, 1
        %p146 = scmp.lt.s32.totalorder %s17, 1
        %s147 = scalar_select %p146, %s17, 1
        %s148 = smul.addr %s147, 2
        %s149 = smul.addr %s148, 4
        %s150 = scalar_lea.vmem %s0, %s149
        %p151 = pneg %p38
        %p152 = pneg %p35
        %p153 = pneg %p59
        %p154 = pneg %p56
        %p155 = pneg %p80
        %p156 = pneg %p77
        %p157 = pneg %p106
        %p158 = pneg %p103
        %s159 = sand.u32 %s93, 1
        %s160 = scalar_lea.sflag [#allocation3], %s159
        %s161 = sand.u32 %s93, 1
        %s162 = smul.addr %s161, 16
        %s163 = scalar_lea.vmem [#allocation2], %s162
        %p164 = scmp.lt.s32.totalorder %s17, 1
        %s165 = scalar_select %p164, %s17, 1
        %s166 = smul.addr %s165, 2
        %s167 = smul.addr %s166, 4
        %s168 = scalar_lea.vmem %s0, %s167
        %v169 = vld [vmem:[%s168] sm:$0xff]
        %v170 = vld [vmem:[%s1] sm:$0xff]
        %v171 = vld [vmem:[%s1 + $0x8] sm:$0xff]
        %v172 = vld [vmem:[%s1 + $0x10] sm:$0xff]
        %v173 = vld [vmem:[%s1 + $0x18] sm:$0xff]
        %v174 = vld [vmem:[%s1 + $0x20] sm:$0xff]
        %v175 = vld [vmem:[%s1 + $0x28] sm:$0xff]
        %v176 = vld [vmem:[%s1 + $0x30] sm:$0xff]
        %v177 = vld [vmem:[%s1 + $0x38] sm:$0xff]
        %v178 = vld [vmem:[%s1 + $0x40] sm:$0xff]
        %180 = vst [vmem:[#allocation1] ss:$2 sm:$0xff] %v169
        %v181 = vld.sshfl [vmem:[#allocation1] sm:$0xff pattern:$0x75316420]
        %v182 = vld.sshfl [vmem:[#allocation1 + $0x8] sm:$0xff pattern:$0x75316420]
        %185 = vrot.lane.b32.xlu0 %v181, 127
        %v186 = vpop.permute.xlu0 %185
        %187 = vrot.lane.b32.xlu0 %v182, 127
        %v188 = vpop.permute.xlu0 %187
        %v189 = vlaneseq
        %v190 = vand.u32 %v189, 127
        %vm191 = vcmp.lt.s32.totalorder %v190, 127
        %v192 = vsel %vm191, %v186, %v188
        %v193 = vsel %vm191, %v188, %v186
        %vm194 = vcmask 31744
        %v196 = vsel %vm194, %v171, 0
        %vm198 = vcmask 1043456
        %v200 = vsel %vm198, %v192, 0
        %v203 = vsel %vm198, %v193, 0
        %205 = vmatpush.msra.mxu0 0.0
        %206 = vmatpush.msra.mxu0 0.0
        %207 = vmatpush.msra.mxu0 0.0
        %208 = vmatpush.msra.mxu0 0.0
        %209 = vmatpush.msra.mxu0 0.0
        %210 = vmatpush.msra.mxu0 0.0
        %211 = vmatpush.msra.mxu0 0.0
        %212 = vmatpush.msra.mxu0 0.0
        %213 = vmatpush.msra.mxu0 0.0
        %214 = vmatpush.msra.mxu0 0.0
        %215 = vmatpush.msra.mxu0 0.0
        %216 = vmatpush.msra.mxu0 0.0
        %217 = vmatpush.msra.mxu0 0.0
        %218 = vmatpush.msra.mxu0 0.0
        %219 = vmatpush.msra.mxu0 0.0
        %220 = vmatpush.msra.mxu0 %v200
        %221 = vmatmul.f32.gmra.mxu0 %v196
        %v222 = vpop.f32.mrf.mxu0
        %v223 = vadd.f32 0.0, %v222
        %224 = vdwg.mxu0
        %225 = vmatpush.msra.mxu0 0.0
        %226 = vmatpush.msra.mxu0 0.0
        %227 = vmatpush.msra.mxu0 0.0
        %228 = vmatpush.msra.mxu0 0.0
        %229 = vmatpush.msra.mxu0 0.0
        %230 = vmatpush.msra.mxu0 0.0
        %231 = vmatpush.msra.mxu0 0.0
        %232 = vmatpush.msra.mxu0 0.0
        %233 = vmatpush.msra.mxu0 0.0
        %234 = vmatpush.msra.mxu0 0.0
        %235 = vmatpush.msra.mxu0 0.0
        %236 = vmatpush.msra.mxu0 0.0
        %237 = vmatpush.msra.mxu0 0.0
        %238 = vmatpush.msra.mxu0 0.0
        %239 = vmatpush.msra.mxu0 0.0
        %240 = vmatpush.msra.mxu0 %v203
        %241 = vmatmul.f32.gmra.mxu0 %v196
        %v242 = vpop.f32.mrf.mxu0
        %v243 = vadd.f32 0.0, %v242
        %244 = vdwg.mxu0
        %245 = vst [vmem:[#allocation1] ss:$2 sm:$0xff] %v169
        %v246 = vld.sshfl [vmem:[#allocation1] sm:$0xff pattern:$0x75316420]
        %v247 = vld.sshfl [vmem:[#allocation1 + $0x8] sm:$0xff pattern:$0x75316420]
        %v249 = vsel %vm194, %v170, 0
        %v251 = vsel %vm198, %v246, 0
        %v253 = vsel %vm198, %v247, 0
        %255 = vmatpush.msra.mxu0 0.0
        %256 = vmatpush.msra.mxu0 0.0
        %257 = vmatpush.msra.mxu0 0.0
        %258 = vmatpush.msra.mxu0 0.0
        %259 = vmatpush.msra.mxu0 0.0
        %260 = vmatpush.msra.mxu0 0.0
        %261 = vmatpush.msra.mxu0 0.0
        %262 = vmatpush.msra.mxu0 0.0
        %263 = vmatpush.msra.mxu0 0.0
        %264 = vmatpush.msra.mxu0 0.0
        %265 = vmatpush.msra.mxu0 0.0
        %266 = vmatpush.msra.mxu0 0.0
        %267 = vmatpush.msra.mxu0 0.0
        %268 = vmatpush.msra.mxu0 0.0
        %269 = vmatpush.msra.mxu0 0.0
        %270 = vmatpush.msra.mxu0 %v251
        %271 = vmatmul.f32.gmra.mxu0 %v249
        %v272 = vpop.f32.mrf.mxu0
        %v273 = vadd.f32 %v223, %v272
        %274 = vdwg.mxu0
        %275 = vmatpush.msra.mxu0 0.0
        %276 = vmatpush.msra.mxu0 0.0
        %277 = vmatpush.msra.mxu0 0.0
        %278 = vmatpush.msra.mxu0 0.0
        %279 = vmatpush.msra.mxu0 0.0
        %280 = vmatpush.msra.mxu0 0.0
        %281 = vmatpush.msra.mxu0 0.0
        %282 = vmatpush.msra.mxu0 0.0
        %283 = vmatpush.msra.mxu0 0.0
        %284 = vmatpush.msra.mxu0 0.0
        %285 = vmatpush.msra.mxu0 0.0
        %286 = vmatpush.msra.mxu0 0.0
        %287 = vmatpush.msra.mxu0 0.0
        %288 = vmatpush.msra.mxu0 0.0
        %289 = vmatpush.msra.mxu0 0.0
        %290 = vmatpush.msra.mxu0 %v253
        %291 = vmatmul.f32.gmra.mxu0 %v249
        %v292 = vpop.f32.mrf.mxu0
        %v293 = vadd.f32 %v243, %v292
        %294 = vdwg.mxu0
        %295 = vst [vmem:[#allocation1] ss:$2 sm:$0xff] %v169
        %v296 = vld.sshfl [vmem:[#allocation1] sm:$0xff pattern:$0x75316420]
        %v297 = vld.sshfl [vmem:[#allocation1 + $0x8] sm:$0xff pattern:$0x75316420]
        %300 = vrot.lane.b32.xlu0 %v296, 126
        %v301 = vpop.permute.xlu0 %300
        %302 = vrot.lane.b32.xlu0 %v297, 126
        %v303 = vpop.permute.xlu0 %302
        %vm304 = vcmp.lt.s32.totalorder %v190, 126
        %v305 = vsel %vm304, %v301, %v303
        %v306 = vsel %vm304, %v303, %v301
        %v308 = vsel %vm194, %v172, 0
        %v311 = vsel %vm198, %v305, 0
        %v314 = vsel %vm198, %v306, 0
        %316 = vmatpush.msra.mxu0 0.0
        %317 = vmatpush.msra.mxu0 0.0
        %318 = vmatpush.msra.mxu0 0.0
        %319 = vmatpush.msra.mxu0 0.0
        %320 = vmatpush.msra.mxu0 0.0
        %321 = vmatpush.msra.mxu0 0.0
        %322 = vmatpush.msra.mxu0 0.0
        %323 = vmatpush.msra.mxu0 0.0
        %324 = vmatpush.msra.mxu0 0.0
        %325 = vmatpush.msra.mxu0 0.0
        %326 = vmatpush.msra.mxu0 0.0
        %327 = vmatpush.msra.mxu0 0.0
        %328 = vmatpush.msra.mxu0 0.0
        %329 = vmatpush.msra.mxu0 0.0
        %330 = vmatpush.msra.mxu0 0.0
        %331 = vmatpush.msra.mxu0 %v311
        %332 = vmatmul.f32.gmra.mxu0 %v308
        %v333 = vpop.f32.mrf.mxu0
        %v334 = vadd.f32 0.0, %v333
        %335 = vdwg.mxu0
        %336 = vmatpush.msra.mxu0 0.0
        %337 = vmatpush.msra.mxu0 0.0
        %338 = vmatpush.msra.mxu0 0.0
        %339 = vmatpush.msra.mxu0 0.0
        %340 = vmatpush.msra.mxu0 0.0
        %341 = vmatpush.msra.mxu0 0.0
        %342 = vmatpush.msra.mxu0 0.0
        %343 = vmatpush.msra.mxu0 0.0
        %344 = vmatpush.msra.mxu0 0.0
        %345 = vmatpush.msra.mxu0 0.0
        %346 = vmatpush.msra.mxu0 0.0
        %347 = vmatpush.msra.mxu0 0.0
        %348 = vmatpush.msra.mxu0 0.0
        %349 = vmatpush.msra.mxu0 0.0
        %350 = vmatpush.msra.mxu0 0.0
        %351 = vmatpush.msra.mxu0 %v314
        %352 = vmatmul.f32.gmra.mxu0 %v308
        %v353 = vpop.f32.mrf.mxu0
        %v354 = vadd.f32 0.0, %v353
        %355 = vdwg.mxu0
        %v356 = vadd.f32 %v273, %v334
        %v357 = vadd.f32 %v293, %v354
        %358 = vst [vmem:[#allocation1] ss:$2 sm:$0xff] %v169
        %v359 = vld.sshfl [vmem:[#allocation1] sm:$0xff pattern:$0x75316420]
        %v360 = vld.sshfl [vmem:[#allocation1 + $0x8] sm:$0xff pattern:$0x75316420]
        %363 = vrot.lane.b32.xlu0 %v359, 112
        %v364 = vpop.permute.xlu0 %363
        %365 = vrot.lane.b32.xlu0 %v360, 112
        %v366 = vpop.permute.xlu0 %365
        %vm367 = vcmp.lt.s32.totalorder %v190, 112
        %v368 = vsel %vm367, %v364, %v366
        %v369 = vsel %vm367, %v366, %v364
        %v371 = vsel %vm194, %v173, 0
        %v374 = vsel %vm198, %v368, 0
        %v377 = vsel %vm198, %v369, 0
        %379 = vmatpush.msra.mxu0 0.0
        %380 = vmatpush.msra.mxu0 0.0
        %381 = vmatpush.msra.mxu0 0.0
        %382 = vmatpush.msra.mxu0 0.0
        %383 = vmatpush.msra.mxu0 0.0
        %384 = vmatpush.msra.mxu0 0.0
        %385 = vmatpush.msra.mxu0 0.0
        %386 = vmatpush.msra.mxu0 0.0
        %387 = vmatpush.msra.mxu0 0.0
        %388 = vmatpush.msra.mxu0 0.0
        %389 = vmatpush.msra.mxu0 0.0
        %390 = vmatpush.msra.mxu0 0.0
        %391 = vmatpush.msra.mxu0 0.0
        %392 = vmatpush.msra.mxu0 0.0
        %393 = vmatpush.msra.mxu0 0.0
        %394 = vmatpush.msra.mxu0 %v374
        %395 = vmatmul.f32.gmra.mxu0 %v371
        %v396 = vpop.f32.mrf.mxu0
        %v397 = vadd.f32 0.0, %v396
        %398 = vdwg.mxu0
        %399 = vmatpush.msra.mxu0 0.0
        %400 = vmatpush.msra.mxu0 0.0
        %401 = vmatpush.msra.mxu0 0.0
        %402 = vmatpush.msra.mxu0 0.0
        %403 = vmatpush.msra.mxu0 0.0
        %404 = vmatpush.msra.mxu0 0.0
        %405 = vmatpush.msra.mxu0 0.0
        %406 = vmatpush.msra.mxu0 0.0
        %407 = vmatpush.msra.mxu0 0.0
        %408 = vmatpush.msra.mxu0 0.0
        %409 = vmatpush.msra.mxu0 0.0
        %410 = vmatpush.msra.mxu0 0.0
        %411 = vmatpush.msra.mxu0 0.0
        %412 = vmatpush.msra.mxu0 0.0
        %413 = vmatpush.msra.mxu0 0.0
        %414 = vmatpush.msra.mxu0 %v377
        %415 = vmatmul.f32.gmra.mxu0 %v371
        %v416 = vpop.f32.mrf.mxu0
        %v417 = vadd.f32 0.0, %v416
        %418 = vdwg.mxu0
        %v419 = vadd.f32 %v356, %v397
        %v420 = vadd.f32 %v357, %v417
        %421 = vst [vmem:[#allocation1] ss:$2 sm:$0xff] %v169
        %v422 = vld.sshfl [vmem:[#allocation1] sm:$0xff pattern:$0x75316420]
        %v423 = vld.sshfl [vmem:[#allocation1 + $0x8] sm:$0xff pattern:$0x75316420]
        %426 = vrot.lane.b32.xlu0 %v422, 111
        %v427 = vpop.permute.xlu0 %426
        %428 = vrot.lane.b32.xlu0 %v423, 111
        %v429 = vpop.permute.xlu0 %428
        %vm430 = vcmp.lt.s32.totalorder %v190, 111
        %v431 = vsel %vm430, %v427, %v429
        %v432 = vsel %vm430, %v429, %v427
        %v434 = vsel %vm194, %v174, 0
        %v437 = vsel %vm198, %v431, 0
        %v440 = vsel %vm198, %v432, 0
        %442 = vmatpush.msra.mxu0 0.0
        %443 = vmatpush.msra.mxu0 0.0
        %444 = vmatpush.msra.mxu0 0.0
        %445 = vmatpush.msra.mxu0 0.0
        %446 = vmatpush.msra.mxu0 0.0
        %447 = vmatpush.msra.mxu0 0.0
        %448 = vmatpush.msra.mxu0 0.0
        %449 = vmatpush.msra.mxu0 0.0
        %450 = vmatpush.msra.mxu0 0.0
        %451 = vmatpush.msra.mxu0 0.0
        %452 = vmatpush.msra.mxu0 0.0
        %453 = vmatpush.msra.mxu0 0.0
        %454 = vmatpush.msra.mxu0 0.0
        %455 = vmatpush.msra.mxu0 0.0
        %456 = vmatpush.msra.mxu0 0.0
        %457 = vmatpush.msra.mxu0 %v437
        %458 = vmatmul.f32.gmra.mxu0 %v434
        %v459 = vpop.f32.mrf.mxu0
        %v460 = vadd.f32 0.0, %v459
        %461 = vdwg.mxu0
        %462 = vmatpush.msra.mxu0 0.0
        %463 = vmatpush.msra.mxu0 0.0
        %464 = vmatpush.msra.mxu0 0.0
        %465 = vmatpush.msra.mxu0 0.0
        %466 = vmatpush.msra.mxu0 0.0
        %467 = vmatpush.msra.mxu0 0.0
        %468 = vmatpush.msra.mxu0 0.0
        %469 = vmatpush.msra.mxu0 0.0
        %470 = vmatpush.msra.mxu0 0.0
        %471 = vmatpush.msra.mxu0 0.0
        %472 = vmatpush.msra.mxu0 0.0
        %473 = vmatpush.msra.mxu0 0.0
        %474 = vmatpush.msra.mxu0 0.0
        %475 = vmatpush.msra.mxu0 0.0
        %476 = vmatpush.msra.mxu0 0.0
        %477 = vmatpush.msra.mxu0 %v440
        %478 = vmatmul.f32.gmra.mxu0 %v434
        %v479 = vpop.f32.mrf.mxu0
        %v480 = vadd.f32 0.0, %v479
        %481 = vdwg.mxu0
        %v482 = vadd.f32 %v419, %v460
        %v483 = vadd.f32 %v420, %v480
        %484 = vst [vmem:[#allocation1] ss:$2 sm:$0xff] %v169
        %v485 = vld.sshfl [vmem:[#allocation1] sm:$0xff pattern:$0x75316420]
        %v486 = vld.sshfl [vmem:[#allocation1 + $0x8] sm:$0xff pattern:$0x75316420]
        %489 = vrot.lane.b32.xlu0 %v485, 110
        %v490 = vpop.permute.xlu0 %489
        %491 = vrot.lane.b32.xlu0 %v486, 110
        %v492 = vpop.permute.xlu0 %491
        %vm493 = vcmp.lt.s32.totalorder %v190, 110
        %v494 = vsel %vm493, %v490, %v492
        %v495 = vsel %vm493, %v492, %v490
        %v497 = vsel %vm194, %v175, 0
        %v500 = vsel %vm198, %v494, 0
        %v503 = vsel %vm198, %v495, 0
        %505 = vmatpush.msra.mxu0 0.0
        %506 = vmatpush.msra.mxu0 0.0
        %507 = vmatpush.msra.mxu0 0.0
        %508 = vmatpush.msra.mxu0 0.0
        %509 = vmatpush.msra.mxu0 0.0
        %510 = vmatpush.msra.mxu0 0.0
        %511 = vmatpush.msra.mxu0 0.0
        %512 = vmatpush.msra.mxu0 0.0
        %513 = vmatpush.msra.mxu0 0.0
        %514 = vmatpush.msra.mxu0 0.0
        %515 = vmatpush.msra.mxu0 0.0
        %516 = vmatpush.msra.mxu0 0.0
        %517 = vmatpush.msra.mxu0 0.0
        %518 = vmatpush.msra.mxu0 0.0
        %519 = vmatpush.msra.mxu0 0.0
        %520 = vmatpush.msra.mxu0 %v500
        %521 = vmatmul.f32.gmra.mxu0 %v497
        %v522 = vpop.f32.mrf.mxu0
        %v523 = vadd.f32 0.0, %v522
        %524 = vdwg.mxu0
        %525 = vmatpush.msra.mxu0 0.0
        %526 = vmatpush.msra.mxu0 0.0
        %527 = vmatpush.msra.mxu0 0.0
        %528 = vmatpush.msra.mxu0 0.0
        %529 = vmatpush.msra.mxu0 0.0
        %530 = vmatpush.msra.mxu0 0.0
        %531 = vmatpush.msra.mxu0 0.0
        %532 = vmatpush.msra.mxu0 0.0
        %533 = vmatpush.msra.mxu0 0.0
        %534 = vmatpush.msra.mxu0 0.0
        %535 = vmatpush.msra.mxu0 0.0
        %536 = vmatpush.msra.mxu0 0.0
        %537 = vmatpush.msra.mxu0 0.0
        %538 = vmatpush.msra.mxu0 0.0
        %539 = vmatpush.msra.mxu0 0.0
        %540 = vmatpush.msra.mxu0 %v503
        %541 = vmatmul.f32.gmra.mxu0 %v497
        %v542 = vpop.f32.mrf.mxu0
        %v543 = vadd.f32 0.0, %v542
        %544 = vdwg.mxu0
        %v545 = vadd.f32 %v482, %v523
        %v546 = vadd.f32 %v483, %v543
        %547 = vst [vmem:[#allocation1] ss:$2 sm:$0xff] %v169
        %v548 = vld.sshfl [vmem:[#allocation1] sm:$0xff pattern:$0x75316420]
        %v549 = vld.sshfl [vmem:[#allocation1 + $0x8] sm:$0xff pattern:$0x75316420]
        %552 = vrot.lane.b32.xlu0 %v548, 96
        %v553 = vpop.permute.xlu0 %552
        %554 = vrot.lane.b32.xlu0 %v549, 96
        %v555 = vpop.permute.xlu0 %554
        %vm556 = vcmp.lt.s32.totalorder %v190, 96
        %v557 = vsel %vm556, %v553, %v555
        %v558 = vsel %vm556, %v555, %v553
        %v560 = vsel %vm194, %v176, 0
        %v563 = vsel %vm198, %v557, 0
        %v566 = vsel %vm198, %v558, 0
        %568 = vmatpush.msra.mxu0 0.0
        %569 = vmatpush.msra.mxu0 0.0
        %570 = vmatpush.msra.mxu0 0.0
        %571 = vmatpush.msra.mxu0 0.0
        %572 = vmatpush.msra.mxu0 0.0
        %573 = vmatpush.msra.mxu0 0.0
        %574 = vmatpush.msra.mxu0 0.0
        %575 = vmatpush.msra.mxu0 0.0
        %576 = vmatpush.msra.mxu0 0.0
        %577 = vmatpush.msra.mxu0 0.0
        %578 = vmatpush.msra.mxu0 0.0
        %579 = vmatpush.msra.mxu0 0.0
        %580 = vmatpush.msra.mxu0 0.0
        %581 = vmatpush.msra.mxu0 0.0
        %582 = vmatpush.msra.mxu0 0.0
        %583 = vmatpush.msra.mxu0 %v563
        %584 = vmatmul.f32.gmra.mxu0 %v560
        %v585 = vpop.f32.mrf.mxu0
        %v586 = vadd.f32 0.0, %v585
        %587 = vdwg.mxu0
        %588 = vmatpush.msra.mxu0 0.0
        %589 = vmatpush.msra.mxu0 0.0
        %590 = vmatpush.msra.mxu0 0.0
        %591 = vmatpush.msra.mxu0 0.0
        %592 = vmatpush.msra.mxu0 0.0
        %593 = vmatpush.msra.mxu0 0.0
        %594 = vmatpush.msra.mxu0 0.0
        %595 = vmatpush.msra.mxu0 0.0
        %596 = vmatpush.msra.mxu0 0.0
        %597 = vmatpush.msra.mxu0 0.0
        %598 = vmatpush.msra.mxu0 0.0
        %599 = vmatpush.msra.mxu0 0.0
        %600 = vmatpush.msra.mxu0 0.0
        %601 = vmatpush.msra.mxu0 0.0
        %602 = vmatpush.msra.mxu0 0.0
        %603 = vmatpush.msra.mxu0 %v566
        %604 = vmatmul.f32.gmra.mxu0 %v560
        %v605 = vpop.f32.mrf.mxu0
        %v606 = vadd.f32 0.0, %v605
        %607 = vdwg.mxu0
        %v608 = vadd.f32 %v545, %v586
        %v609 = vadd.f32 %v546, %v606
        %610 = vst [vmem:[#allocation1] ss:$2 sm:$0xff] %v169
        %v611 = vld.sshfl [vmem:[#allocation1] sm:$0xff pattern:$0x75316420]
        %v612 = vld.sshfl [vmem:[#allocation1 + $0x8] sm:$0xff pattern:$0x75316420]
        %615 = vrot.lane.b32.xlu0 %v611, 95
        %v616 = vpop.permute.xlu0 %615
        %617 = vrot.lane.b32.xlu0 %v612, 95
        %v618 = vpop.permute.xlu0 %617
        %vm619 = vcmp.lt.s32.totalorder %v190, 95
        %v620 = vsel %vm619, %v616, %v618
        %v621 = vsel %vm619, %v618, %v616
        %v623 = vsel %vm194, %v177, 0
        %v626 = vsel %vm198, %v620, 0
        %v629 = vsel %vm198, %v621, 0
        %631 = vmatpush.msra.mxu0 0.0
        %632 = vmatpush.msra.mxu0 0.0
        %633 = vmatpush.msra.mxu0 0.0
        %634 = vmatpush.msra.mxu0 0.0
        %635 = vmatpush.msra.mxu0 0.0
        %636 = vmatpush.msra.mxu0 0.0
        %637 = vmatpush.msra.mxu0 0.0
        %638 = vmatpush.msra.mxu0 0.0
        %639 = vmatpush.msra.mxu0 0.0
        %640 = vmatpush.msra.mxu0 0.0
        %641 = vmatpush.msra.mxu0 0.0
        %642 = vmatpush.msra.mxu0 0.0
        %643 = vmatpush.msra.mxu0 0.0
        %644 = vmatpush.msra.mxu0 0.0
        %645 = vmatpush.msra.mxu0 0.0
        %646 = vmatpush.msra.mxu0 %v626
        %647 = vmatmul.f32.gmra.mxu0 %v623
        %v648 = vpop.f32.mrf.mxu0
        %v649 = vadd.f32 0.0, %v648
        %650 = vdwg.mxu0
        %651 = vmatpush.msra.mxu0 0.0
        %652 = vmatpush.msra.mxu0 0.0
        %653 = vmatpush.msra.mxu0 0.0
        %654 = vmatpush.msra.mxu0 0.0
        %655 = vmatpush.msra.mxu0 0.0
        %656 = vmatpush.msra.mxu0 0.0
        %657 = vmatpush.msra.mxu0 0.0
        %658 = vmatpush.msra.mxu0 0.0
        %659 = vmatpush.msra.mxu0 0.0
        %660 = vmatpush.msra.mxu0 0.0
        %661 = vmatpush.msra.mxu0 0.0
        %662 = vmatpush.msra.mxu0 0.0
        %663 = vmatpush.msra.mxu0 0.0
        %664 = vmatpush.msra.mxu0 0.0
        %665 = vmatpush.msra.mxu0 0.0
        %666 = vmatpush.msra.mxu0 %v629
        %667 = vmatmul.f32.gmra.mxu0 %v623
        %v668 = vpop.f32.mrf.mxu0
        %v669 = vadd.f32 0.0, %v668
        %670 = vdwg.mxu0
        %v671 = vadd.f32 %v608, %v649
        %v672 = vadd.f32 %v609, %v669
        %673 = vst [vmem:[#allocation1] ss:$2 sm:$0xff] %v169
        %v674 = vld.sshfl [vmem:[#allocation1] sm:$0xff pattern:$0x75316420]
        %v675 = vld.sshfl [vmem:[#allocation1 + $0x8] sm:$0xff pattern:$0x75316420]
        %678 = vrot.lane.b32.xlu0 %v674, 94
        %v679 = vpop.permute.xlu0 %678
        %680 = vrot.lane.b32.xlu0 %v675, 94
        %v681 = vpop.permute.xlu0 %680
        %vm682 = vcmp.lt.s32.totalorder %v190, 94
        %v683 = vsel %vm682, %v679, %v681
        %v684 = vsel %vm682, %v681, %v679
        %v686 = vsel %vm194, %v178, 0
        %v689 = vsel %vm198, %v683, 0
        %v692 = vsel %vm198, %v684, 0
        %694 = vmatpush.msra.mxu0 0.0
        %695 = vmatpush.msra.mxu0 0.0
        %696 = vmatpush.msra.mxu0 0.0
        %697 = vmatpush.msra.mxu0 0.0
        %698 = vmatpush.msra.mxu0 0.0
        %699 = vmatpush.msra.mxu0 0.0
        %700 = vmatpush.msra.mxu0 0.0
        %701 = vmatpush.msra.mxu0 0.0
        %702 = vmatpush.msra.mxu0 0.0
        %703 = vmatpush.msra.mxu0 0.0
        %704 = vmatpush.msra.mxu0 0.0
        %705 = vmatpush.msra.mxu0 0.0
        %706 = vmatpush.msra.mxu0 0.0
        %707 = vmatpush.msra.mxu0 0.0
        %708 = vmatpush.msra.mxu0 0.0
        %709 = vmatpush.msra.mxu0 %v689
        %710 = vmatmul.f32.gmra.mxu0 %v686
        %v711 = vpop.f32.mrf.mxu0
        %v712 = vadd.f32 0.0, %v711
        %713 = vdwg.mxu0
        %714 = vmatpush.msra.mxu0 0.0
        %715 = vmatpush.msra.mxu0 0.0
        %716 = vmatpush.msra.mxu0 0.0
        %717 = vmatpush.msra.mxu0 0.0
        %718 = vmatpush.msra.mxu0 0.0
        %719 = vmatpush.msra.mxu0 0.0
        %720 = vmatpush.msra.mxu0 0.0
        %721 = vmatpush.msra.mxu0 0.0
        %722 = vmatpush.msra.mxu0 0.0
        %723 = vmatpush.msra.mxu0 0.0
        %724 = vmatpush.msra.mxu0 0.0
        %725 = vmatpush.msra.mxu0 0.0
        %726 = vmatpush.msra.mxu0 0.0
        %727 = vmatpush.msra.mxu0 0.0
        %728 = vmatpush.msra.mxu0 0.0
        %729 = vmatpush.msra.mxu0 %v692
        %730 = vmatmul.f32.gmra.mxu0 %v686
        %v731 = vpop.f32.mrf.mxu0
        %v732 = vadd.f32 0.0, %v731
        %733 = vdwg.mxu0
        %v734 = vadd.f32 %v671, %v712
        %v735 = vadd.f32 %v672, %v732
        %v736 = vld [vmem:[%s2] sm:$0xff]
        %738 = vset.pattern.permute.xlu0 0
        %739 = vperm.xlu0 %738, %v736
        %v740 = vpop.permute.xlu0 %739
        %v742 = vadd.f32 %v734, %v740
        %v743 = vadd.f32 %v735, %v740
        %744 = vst [vmem:[%s163] sm:$0xff] %v742
        %745 = vst [vmem:[%s163 + $0x8] sm:$0xff] %v743
        %s746 = sand.u32 %s93, 1
        %s747 = scalar_lea.sflag [#allocation3], %s746
        %s748 = sand.u32 %s93, 1
        %s749 = smul.addr %s748, 16
        %s750 = scalar_lea.vmem [#allocation2], %s749
        // Predicated region
        $region33: #{tpu_custom_call.1} parent=31 // pred_check
          %p751 = pneg %p103
        $region34: #{tpu_custom_call.1} parent=31 // pred_check_branch
          %753 = sbr.rel (%p751) target = $region36
        $region35: #{tpu_custom_call.1} parent=31 // pred_region
          %755 = vsyncadd %s747, 0
          %s756 = smul.addr %s17, 2
          %s757 = smul.addr %s756, 8
          %s758 = scalar_lea.hbm %s3, %s757
          %s760 = sshll.u32 %s750, 4
          %s761 = int_to_ptr.vmem [resolvable:$true] %s760
          %s762 = sshll.u32 %s758, 4
          %s763 = int_to_ptr.hbm [resolvable:$true] %s762
          %765 = dma.vmem_to_hbm [thread:$0]  %s761, 256, %s763, %s747
        $region36: #{tpu_custom_call.1} parent=31 // pred_fallthru
          _
      $region32: #{tpu_custom_call.1} parent=5 // pred_fallthru
        _
      %p766 = scmp.le.s32.totalorder 2, %s12
      // Predicated region
      $region37: #{tpu_custom_call.1} parent=5 // pred_check
        %p767 = pneg %p766
      $region38: #{tpu_custom_call.1} parent=5 // pred_check_branch
        %769 = sbr.rel (%p767) target = $region40
      $region39: #{tpu_custom_call.1} parent=5 // pred_region
        %s770 = ssub.s32 %s12, 2
        // Predicated region
        $region41: #{tpu_custom_call.1} parent=39 // pred_check
          %p771 = pneg %p109
        $region42: #{tpu_custom_call.1} parent=39 // pred_check_branch
          %773 = sbr.rel (%p771) target = $region44
        $region43: #{tpu_custom_call.1} parent=39 // pred_region
          %s774 = sand.u32 %s94, 1
          %s775 = scalar_lea.sflag [#allocation3], %s774
          %s776 = sand.u32 %s94, 1
          %s777 = smul.addr %s776, 16
          %s778 = scalar_lea.vmem [#allocation2], %s777
          %780 = dma.done %s775, 256
        $region44: #{tpu_custom_call.1} parent=39 // pred_fallthru
          _
      $region40: #{tpu_custom_call.1} parent=5 // pred_fallthru
        _
    $region6: #{tpu_custom_call.1} parent=1 // loop_footer
      %s16 = sadd.s32 1, %s12
    $region7: #{tpu_custom_call.1} parent=1 // loop_footer_branch
      %11 = sbr.rel target = $region3
    $region8: #{tpu_custom_call.1} parent=1 // loop_exit
      _
    %781 = vsyncpa [#allocation3], 1
    %s782 = scalar_lea.sflag [#allocation3], 1
    %783 = vsyncpa %s782, 1

</llo_original>
